<compile_context>
chip_gen: v7x
topology: tpu7x:2x2x1
jax: 0.10.0
libtpu: 0.0.40
codegen_flags: <defaults>
</compile_context>

<pallas_src>
import math

import jax
import jax.numpy as jnp
from jax.experimental import pallas as pl
from jax.experimental.pallas import tpu as pltpu


# ----------------------------------------------------------------------------
# Row-tiled linear projection (x @ w + b) on the MXU
# ----------------------------------------------------------------------------

def _linear_kernel(x_ref, w_ref, b_ref, o_ref):
    o_ref[...] = (jnp.dot(x_ref[...], w_ref[...],
                          preferred_element_type=jnp.float32)
                  + b_ref[...]).astype(o_ref.dtype)


def linear_pallas(x, w, b, *, out_dtype=jnp.float32, tile_m=512):
    """y = x @ w + b, tiled over rows so the HBM<->VMEM pipeline double-buffers."""
    M, K = x.shape
    K2, Nc = w.shape
    assert K == K2
    if M <= tile_m:
        tm, Mp, xp = M, M, x
    else:
        tm = tile_m                                     # multiple of 8 by construction
        Mp = ((M + tm - 1) // tm) * tm
        xp = jnp.pad(x, ((0, Mp - M), (0, 0))) if Mp != M else x
    out = pl.pallas_call(
        _linear_kernel,
        out_shape=jax.ShapeDtypeStruct((Mp, Nc), out_dtype),
        grid=(Mp // tm,),
        in_specs=[
            pl.BlockSpec((tm, K), lambda i: (i, 0)),
            pl.BlockSpec((K, Nc), lambda i: (0, 0)),
            pl.BlockSpec((1, Nc), lambda i: (0, 0)),
        ],
        out_specs=pl.BlockSpec((tm, Nc), lambda i: (i, 0)),
        compiler_params=pltpu.CompilerParams(
            dimension_semantics=("parallel",)),
    )(xp, w, b.reshape(1, Nc))
    return out[:M] if Mp != M else out


# ----------------------------------------------------------------------------
# Core multi-scale deformable attention kernel
# ----------------------------------------------------------------------------

def _make_deform_kernel(spatial_shapes, n_heads, n_levels, n_points, d_head):
    """Kernel closure; spatial_shapes / sizes are static Python values."""
    H, L, P, D = n_heads, n_levels, n_points, d_head
    level_starts = []
    s = 0
    for (hl, wl) in spatial_shapes:
        level_starts.append(s)
        s += hl * wl

    def kernel(him_ref, wim_ref, attn_ref, val_ref, out_ref):
        # Blocks (one (batch, q-tile) per grid step, all H heads handled here so the
        # output store is lane-dense over H*D columns):
        #   him/wim/attn : (1, TQ, H*L*P)   f32
        #   val          : (1, Len_in, H*D) value dtype (bf16 by default)
        #   out          : (1, TQ, H*D)     f32
        him = him_ref[0]
        wim = wim_ref[0]
        attn = attn_ref[0]
        TQ = him.shape[0]

        acc = [jnp.zeros((TQ, D), jnp.float32) for _ in range(H)]

        for l, (hl, wl) in enumerate(spatial_shapes):          # static level loop
            hw = hl * wl
            start = level_starts[l]
            # Per-key (row, col) coordinates of level l, rebuilt on the VPU from an
            # iota (no (1, Len_in) coordinate DMAs, no level mask input).
            kidx = jax.lax.broadcasted_iota(jnp.int32, (1, hw), 1).astype(jnp.float32)
            krow = jnp.floor((kidx + 0.5) / float(wl))
            kcol = kidx - krow * float(wl)

            for h in range(H):                                 # static head loop
                # Bilinear weights of level-l keys, summed over this level's P points.
                Wl = jnp.zeros((TQ, hw), jnp.float32)
                for p in range(P):                             # static point loop
                    c = (h * L + l) * P + p
                    dh = krow - him[:, c:c + 1]
                    dw = kcol - wim[:, c:c + 1]
                    tri = (jnp.maximum(0.0, 1.0 - jnp.abs(dh)) *
                           jnp.maximum(0.0, 1.0 - jnp.abs(dw)))
                    Wl = Wl + attn[:, c:c + 1] * tri
                # Per-level accumulated matmul (K-chunked by level); f32 accumulation.
                v = val_ref[0, start:start + hw, h * D:(h + 1) * D]
                acc[h] = acc[h] + jnp.dot(Wl.astype(v.dtype), v,
                                          preferred_element_type=jnp.float32)

        for h in range(H):
            out_ref[0, :, h * D:(h + 1) * D] = acc[h].astype(out_ref.dtype)

    return kernel


def deform_attn_core(him, wim, attn, value, spatial_shapes, *,
                     n_heads, n_levels, n_points, d_head):
    """him/wim/attn: (N, Len_q, H*L*P) f32; value: (N, Len_in, H*D) -> (N, Len_q, H*D) f32."""
    N, Len_q, HLP = him.shape
    _, Len_in, HD = value.shape
    assert HLP == n_heads * n_levels * n_points and HD == n_heads * d_head

    # Query tile: full Len_q when small, otherwise 128-row tiles (sublane-aligned).
    tq = 128 if (Len_q > 128 and Len_q % 128 == 0) else Len_q

    # TODO(synk): for very large Len_in (v7x 64 MiB VMEM) add a key-chunk / per-level grid
    # axis with a VMEM accumulator instead of holding the full (Len_in, H*D) value block.
    kernel = _make_deform_kernel(spatial_shapes, n_heads, n_levels, n_points, d_head)
    return pl.pallas_call(
        kernel,
        out_shape=jax.ShapeDtypeStruct((N, Len_q, HD), jnp.float32),
        grid=(N, Len_q // tq),
        in_specs=[
            pl.BlockSpec((1, tq, HLP), lambda b, q: (b, q, 0)),
            pl.BlockSpec((1, tq, HLP), lambda b, q: (b, q, 0)),
            pl.BlockSpec((1, tq, HLP), lambda b, q: (b, q, 0)),
            pl.BlockSpec((1, Len_in, HD), lambda b, q: (b, 0, 0)),
        ],
        out_specs=pl.BlockSpec((1, tq, HD), lambda b, q: (b, q, 0)),
        compiler_params=pltpu.CompilerParams(
            dimension_semantics=("parallel", "parallel")),
    )(him, wim, attn, value)


# ----------------------------------------------------------------------------
# Parameter init (mirrors MSDeformAttn._reset_parameters, deterministic)
# ----------------------------------------------------------------------------

def init_ms_deform_attn_params(key, dim_model, dim_single_head, n_levels,
                               n_heads, n_points):
    H, L, P, D = n_heads, n_levels, n_points, dim_single_head
    HLP = H * L * P

    # sampling_offsets: weight = 0, bias = directional grid init
    thetas = jnp.arange(H, dtype=jnp.float32) * (2.0 * math.pi / H)
    grid_init = jnp.stack([jnp.cos(thetas), jnp.sin(thetas)], -1)          # (H, 2)
    grid_init = grid_init / jnp.max(jnp.abs(grid_init), axis=-1, keepdims=True)
    grid_init = jnp.tile(grid_init.reshape(H, 1, 1, 2), (1, L, P, 1))
    scale = (jnp.arange(P, dtype=jnp.float32) + 1.0).reshape(1, 1, P, 1)
    grid_init = grid_init * scale                                          # (H, L, P, 2)

    def xavier(k, fan_in, fan_out):
        bound = math.sqrt(6.0 / (fan_in + fan_out))
        return jax.random.uniform(k, (fan_in, fan_out), jnp.float32,
                                  minval=-bound, maxval=bound)

    kv, ko = jax.random.split(key)
    # Fused sampling_offsets (+bias grid init) and attention_weights projection:
    # columns [0 : 2*HLP] -> offsets, [2*HLP : 3*HLP] -> attention logits.
    so_w = jnp.zeros((dim_model, HLP * 2), jnp.float32)
    aw_w = jnp.zeros((dim_model, HLP), jnp.float32)
    so_b = grid_init.reshape(-1)
    aw_b = jnp.zeros((HLP,), jnp.float32)
    return {
        "soaw_w": jnp.concatenate([so_w, aw_w], axis=1),
        "soaw_b": jnp.concatenate([so_b, aw_b], axis=0),
        "v_w": xavier(kv, dim_model, H * D),
        "v_b": jnp.zeros((H * D,), jnp.float32),
        "o_w": xavier(ko, H * D, dim_model),
        "o_b": jnp.zeros((dim_model,), jnp.float32),
    }


# ----------------------------------------------------------------------------
# Forward (MSDeformAttn.forward, reference_points last dim == 2 path)
# ----------------------------------------------------------------------------

def ms_deform_attn_forward(params, query, reference_points, input_flatten,
                           spatial_shapes, input_padding_mask=None, *,
                           n_heads, n_levels, n_points, dim_single_head,
                           value_dtype=jnp.bfloat16, out_sample_loc=False):
    N, Len_q, dm = query.shape
    _, Len_in, _ = input_flatten.shape
    H, L, P, D = n_heads, n_levels, n_points, dim_single_head
    LP, HLP, HD = L * P, H * L * P, H * D
    spatial_shapes = tuple((int(h), int(w)) for h, w in spatial_shapes)
    assert sum(h * w for h, w in spatial_shapes) == Len_in
    assert reference_points.shape[-1] == 2
    # TODO(synk): reference_points with last dim == 4 (box form) path not implemented.

    # --- value projection (row-tiled Pallas matmul), produced directly in the
    # (N, Len_in, H*D) head-major-column layout the core kernel consumes (no transpose),
    # stored in bf16 for the MXU (weight math & accumulation stay f32). ---
    value = linear_pallas(input_flatten.reshape(N * Len_in, dm),
                          params["v_w"], params["v_b"], out_dtype=value_dtype)
    value = value.reshape(N, Len_in, HD)
    if input_padding_mask is not None:
        value = jnp.where(input_padding_mask[..., None], 0.0, value)

    # --- fused sampling_offsets + attention_weights projection (one GEMM on query) ---
    qa = linear_pallas(query.reshape(N * Len_q, dm),
                       params["soaw_w"], params["soaw_b"])
    sampling_offsets = qa[:, :2 * HLP].reshape(N, Len_q, H, L, P, 2)
    attn_logits = qa[:, 2 * HLP:].reshape(N, Len_q, H, LP)
    attn = jax.nn.softmax(attn_logits, axis=-1)               # (N, Len_q, H, L*P)

    hs = jnp.asarray([s[0] for s in spatial_shapes], jnp.float32)   # (L,)
    ws = jnp.asarray([s[1] for s in spatial_shapes], jnp.float32)
    offset_normalizer = jnp.stack([ws, hs], -1)                     # (L, 2) = (w, h)
    sampling_locations = (reference_points[:, :, None, :, None, :]
                          + sampling_offsets
                          / offset_normalizer[None, None, None, :, None, :])

    # normalized [0,1] -> pixel coords, CUDA ms_deform_attn convention (align_corners=False)
    him = sampling_locations[..., 1] * hs[None, None, None, :, None] - 0.5
    wim = sampling_locations[..., 0] * ws[None, None, None, :, None] - 0.5
    him = him.reshape(N, Len_q, HLP)        # column = (h*L + l)*P + p
    wim = wim.reshape(N, Len_q, HLP)
    attn_flat = attn.reshape(N, Len_q, HLP)

    # --- core multi-scale deformable attention (Pallas kernel), output already in
    # (N, Len_q, H*D) layout -> feeds output projection with no transpose. ---
    out = deform_attn_core(him, wim, attn_flat, value, spatial_shapes,
                           n_heads=H, n_levels=L, n_points=P, d_head=D)

    # --- output projection (row-tiled Pallas matmul) ---
    out = linear_pallas(out.reshape(N * Len_q, HD), params["o_w"], params["o_b"])
    out = out.reshape(N, Len_q, dm)

    if out_sample_loc:
        sample_loc = jnp.concatenate(
            [sampling_locations, attn.reshape(N, Len_q, H, L, P)[..., None]], axis=-1)
        return out, sample_loc
    return out, None


# ----------------------------------------------------------------------------
# Demo
# ----------------------------------------------------------------------------

if __name__ == "__main__":
    dim_model = 32
    dim_single_head = 8
    n_levels = 2
    n_heads = 4
    n_points = 4

    N = 2
    Len_q = 8
    spatial_shapes = ((8, 8), (4, 4))                # (h, w) per level
    Len_in = sum(h * w for h, w in spatial_shapes)   # 80

    key = jax.random.PRNGKey(0)
    kq, kin, kref, kp = jax.random.split(key, 4)
    query = jax.random.normal(kq, (N, Len_q, dim_model), jnp.float32)
    input_flatten = jax.random.normal(kin, (N, Len_in, dim_model), jnp.float32)
    reference_points = jax.random.uniform(kref, (N, Len_q, n_levels, 2), jnp.float32)

    params = init_ms_deform_attn_params(kp, dim_model, dim_single_head,
                                        n_levels, n_heads, n_points)

    out, _ = ms_deform_attn_forward(params, query, reference_points, input_flatten,
                                    spatial_shapes, input_padding_mask=None,
                                    n_heads=n_heads, n_levels=n_levels,
                                    n_points=n_points,
                                    dim_single_head=dim_single_head)
    out = jax.block_until_ready(out)
    assert out.shape == (N, Len_q, dim_model)
    assert bool(jnp.all(jnp.isfinite(out)))
    print("KERNEL_OK")
</pallas_src>

<mosaic_0001>
module attributes {stable_mosaic.version = 11 : i64} {
  func.func @_linear_kernel(%arg0: i32, %arg1: memref<160x32xf32, #tpu.memory_space<vmem>>, %arg2: memref<32x32xf32, #tpu.memory_space<vmem>>, %arg3: memref<1x32xf32, #tpu.memory_space<vmem>>, %arg4: memref<160x32xbf16, #tpu.memory_space<vmem>>) attributes {dimension_semantics = [#tpu.dimension_semantics<parallel>], iteration_bounds = array<i64: 1>, scalar_prefetch = 0 : i64, scratch_operands = 0 : i64, tpu.core_type = #tpu.core_type<tc>, window_params = [{transform_indices = @transform_0, window_bounds = array<i64: 160, 32>}, {pipeline_mode = #tpu.pipeline_mode<synchronous>, transform_indices = @transform_1, window_bounds = array<i64: 32, 32>}, {pipeline_mode = #tpu.pipeline_mode<synchronous>, transform_indices = @transform_2, window_bounds = array<i64: 1, 32>}, {transform_indices = @transform_3, window_bounds = array<i64: 160, 32>}]} {
    %c0 = arith.constant 0 : index
    %c0_0 = arith.constant 0 : index
    %0 = vector.load %arg1[%c0, %c0_0] : memref<160x32xf32, #tpu.memory_space<vmem>>, vector<160x32xf32>
    %c0_1 = arith.constant 0 : index
    %c0_2 = arith.constant 0 : index
    %1 = vector.load %arg2[%c0_1, %c0_2] : memref<32x32xf32, #tpu.memory_space<vmem>>, vector<32x32xf32>
    %cst = arith.constant dense<0.000000e+00> : vector<160x32xf32>
    %2 = tpu.matmul %0, %1, %cst {dimension_numbers = #tpu.dot_dimension_numbers<[1], [0], [0], [1], [0, 0, 1, 1], [], []>} : vector<160x32xf32>, vector<32x32xf32>, vector<160x32xf32> -> vector<160x32xf32>
    %c0_3 = arith.constant 0 : index
    %c0_4 = arith.constant 0 : index
    %3 = vector.load %arg3[%c0_3, %c0_4] : memref<1x32xf32, #tpu.memory_space<vmem>>, vector<1x32xf32>
    %4 = vector.broadcast %3 : vector<1x32xf32> to vector<160x32xf32>
    %5 = arith.addf %2, %4 : vector<160x32xf32>
    %6 = arith.truncf %5 : vector<160x32xf32> to vector<160x32xbf16>
    %c0_5 = arith.constant 0 : index
    %c0_6 = arith.constant 0 : index
    %7 = vector.load %arg4[%c0_5, %c0_6] : memref<160x32xbf16, #tpu.memory_space<vmem>>, vector<160x32xbf16>
    tpu.vector_store %arg4[%c0_5, %c0_6], %6 {strides = array<i32>} : memref<160x32xbf16, #tpu.memory_space<vmem>>, vector<160x32xbf16>,
    return
  }
  func.func @transform_0(%arg0: i32) -> (i32, i32) {
    %c0_i32 = arith.constant 0 : i32
    %c0_i32_0 = arith.constant 0 : i32
    return %arg0, %c0_i32 : i32, i32
  }
  func.func @transform_1(%arg0: i32) -> (i32, i32) {
    %c0_i32 = arith.constant 0 : i32
    %c0_i32_0 = arith.constant 0 : i32
    %c0_i32_1 = arith.constant 0 : i32
    return %c0_i32, %c0_i32_0 : i32, i32
  }
  func.func @transform_2(%arg0: i32) -> (i32, i32) {
    %c0_i32 = arith.constant 0 : i32
    %c0_i32_0 = arith.constant 0 : i32
    %c0_i32_1 = arith.constant 0 : i32
    return %c0_i32, %c0_i32_0 : i32, i32
  }
  func.func @transform_3(%arg0: i32) -> (i32, i32) {
    %c0_i32 = arith.constant 0 : i32
    %c0_i32_0 = arith.constant 0 : i32
    return %arg0, %c0_i32 : i32, i32
  }
}

</mosaic_0001>

<llo_original>
// kernel: tpu_custom_call.1
$region0: #{tpu_custom_call.1}
  #allocation0 [shape = 'u32[]', space=smem, size = 0x4, offset = 0x4, fixed_abs, tag = 'smem constant byte address 0x4 - core index']
  #allocation1 [shape = 'u32[144,128]{1,0:T(1,128)}', space=vmem, size = 0x12000, scoped, tag = 'internal scratch']
  %s0 = inlined_call_operand.vmem [shape: f32[160,32], index: 0, kind: input, shape index: {}]
  %s1 = inlined_call_operand.vmem [shape: f32[32,32], index: 1, kind: input, shape index: {}]
  %s2 = inlined_call_operand.vmem [shape: f32[1,32], index: 2, kind: input, shape index: {}]
  %s3 = inlined_call_operand.vmem [shape: bf16[160,32], index: 3, kind: output, shape index: {}]
  %s4 = sld [smem:[#allocation0]]
  $region22: #{tpu_custom_call.1} parent=0
    _
  %s6 = ssub.s32 1, %s4
  %s7 = scalar_select 0, %s6, %s4
  // Predicated region
  $region2: #{tpu_custom_call.1} parent=0 // pred_check
    _
  $region3: #{tpu_custom_call.1} parent=0 // pred_check_branch
    %9 = sbr.rel (0) target = $region5
  $region4: #{tpu_custom_call.1} parent=0 // pred_region
    _
  $region5: #{tpu_custom_call.1} parent=0 // pred_fallthru
    _
  // Predicated region
  $region6: #{tpu_custom_call.1} parent=0 // pred_check
    _
  $region7: #{tpu_custom_call.1} parent=0 // pred_check_branch
    %11 = sbr.rel (0) target = $region9
  $region8: #{tpu_custom_call.1} parent=0 // pred_region
    _
  $region9: #{tpu_custom_call.1} parent=0 // pred_fallthru
    _
  // Predicated region
  $region10: #{tpu_custom_call.1} parent=0 // pred_check
    _
  $region11: #{tpu_custom_call.1} parent=0 // pred_check_branch
    %13 = sbr.rel (0) target = $region13
  $region12: #{tpu_custom_call.1} parent=0 // pred_region
    _
  $region13: #{tpu_custom_call.1} parent=0 // pred_fallthru
    _
  %v14 = vld [vmem:[%s0] sm:$0xff]
  %v15 = vld [vmem:[%s0 + $0x8] sm:$0xff]
  %v16 = vld [vmem:[%s0 + $0x10] sm:$0xff]
  %v17 = vld [vmem:[%s0 + $0x18] sm:$0xff]
  %v18 = vld [vmem:[%s0 + $0x20] sm:$0xff]
  %v19 = vld [vmem:[%s0 + $0x28] sm:$0xff]
  %v20 = vld [vmem:[%s0 + $0x30] sm:$0xff]
  %v21 = vld [vmem:[%s0 + $0x38] sm:$0xff]
  %v22 = vld [vmem:[%s0 + $0x40] sm:$0xff]
  %v23 = vld [vmem:[%s0 + $0x48] sm:$0xff]
  %v24 = vld [vmem:[%s0 + $0x50] sm:$0xff]
  %v25 = vld [vmem:[%s0 + $0x58] sm:$0xff]
  %v26 = vld [vmem:[%s0 + $0x60] sm:$0xff]
  %v27 = vld [vmem:[%s0 + $0x68] sm:$0xff]
  %v28 = vld [vmem:[%s0 + $0x70] sm:$0xff]
  %v29 = vld [vmem:[%s0 + $0x78] sm:$0xff]
  %v30 = vld [vmem:[%s0 + $0x80] sm:$0xff]
  %v31 = vld [vmem:[%s0 + $0x88] sm:$0xff]
  %v32 = vld [vmem:[%s0 + $0x90] sm:$0xff]
  %v33 = vld [vmem:[%s0 + $0x98] sm:$0xff]
  %v34 = vld [vmem:[%s1] sm:$0xff]
  %v35 = vld [vmem:[%s1 + $0x8] sm:$0xff]
  %v36 = vld [vmem:[%s1 + $0x10] sm:$0xff]
  %v37 = vld [vmem:[%s1 + $0x18] sm:$0xff]
  %v38 = vld [vmem:[%s2] sm:$0x1]
  %v40 = vlaneseq
  %v41 = vshrl.u32 %v40, 7
  %v42 = vsub.s32 0, %v41
  %v43 = vrot.slane %v38, %v42
  %vm45 = vcmask 261120
  %v47 = vsel %vm45, %v14, 0
  %v50 = vsel %vm45, %v15, 0
  %v53 = vsel %vm45, %v16, 0
  %v56 = vsel %vm45, %v17, 0
  %v59 = vsel %vm45, %v18, 0
  %v62 = vsel %vm45, %v19, 0
  %v65 = vsel %vm45, %v20, 0
  %v68 = vsel %vm45, %v21, 0
  %v71 = vsel %vm45, %v22, 0
  %v74 = vsel %vm45, %v23, 0
  %v77 = vsel %vm45, %v24, 0
  %v80 = vsel %vm45, %v25, 0
  %v83 = vsel %vm45, %v26, 0
  %v86 = vsel %vm45, %v27, 0
  %v89 = vsel %vm45, %v28, 0
  %v92 = vsel %vm45, %v29, 0
  %v95 = vsel %vm45, %v30, 0
  %v98 = vsel %vm45, %v31, 0
  %v101 = vsel %vm45, %v32, 0
  %v104 = vsel %vm45, %v33, 0
  %106 = vmatprep.subr.mxu0 0.0
  %107 = vmatpush1.msra.mxu0 %v34
  %108 = vmatprep.subr.mxu0 0.0
  %109 = vmatpush1.msra.mxu0 %v35
  %110 = vmatprep.subr.mxu0 0.0
  %111 = vmatpush1.msra.mxu0 %v36
  %112 = vmatprep.subr.mxu0 0.0
  %113 = vmatpush1.msra.mxu0 %v37
  %114 = vmatprep.subr.mxu0 0.0
  %115 = vmatpush1.msra.mxu0 0.0
  %116 = vmatprep.subr.mxu0 0.0
  %117 = vmatpush1.msra.mxu0 0.0
  %118 = vmatprep.subr.mxu0 0.0
  %119 = vmatpush1.msra.mxu0 0.0
  %120 = vmatprep.subr.mxu0 0.0
  %121 = vmatpush1.msra.mxu0 0.0
  %122 = vmatprep.subr.mxu0 0.0
  %123 = vmatpush1.msra.mxu0 0.0
  %124 = vmatprep.subr.mxu0 0.0
  %125 = vmatpush1.msra.mxu0 0.0
  %126 = vmatprep.subr.mxu0 0.0
  %127 = vmatpush1.msra.mxu0 0.0
  %128 = vmatprep.subr.mxu0 0.0
  %129 = vmatpush1.msra.mxu0 0.0
  %130 = vmatprep.subr.mxu0 0.0
  %131 = vmatpush1.msra.mxu0 0.0
  %132 = vmatprep.subr.mxu0 0.0
  %133 = vmatpush1.msra.mxu0 0.0
  %134 = vmatprep.subr.mxu0 0.0
  %135 = vmatpush1.msra.mxu0 0.0
  %136 = vmatprep.subr.mxu0 0.0
  %137 = vmatpush1.msra.mxu0 0.0
  %138 = vmatprep.subr.mxu0 0.0
  %139 = vmatpush1.msra.mxu0 0.0
  %140 = vmatprep.subr.mxu0 0.0
  %141 = vmatpush1.msra.mxu0 0.0
  %142 = vmatprep.subr.mxu0 0.0
  %143 = vmatpush1.msra.mxu0 0.0
  %144 = vmatprep.subr.mxu0 0.0
  %145 = vmatpush1.msra.mxu0 0.0
  %146 = vmatprep.subr.mxu0 0.0
  %147 = vmatpush1.msra.mxu0 0.0
  %148 = vmatprep.subr.mxu0 0.0
  %149 = vmatpush1.msra.mxu0 0.0
  %150 = vmatprep.subr.mxu0 0.0
  %151 = vmatpush1.msra.mxu0 0.0
  %152 = vmatprep.subr.mxu0 0.0
  %153 = vmatpush1.msra.mxu0 0.0
  %154 = vmatprep.subr.mxu0 0.0
  %155 = vmatpush1.msra.mxu0 0.0
  %156 = vmatprep.subr.mxu0 0.0
  %157 = vmatpush1.msra.mxu0 0.0
  %158 = vmatprep.subr.mxu0 0.0
  %159 = vmatpush1.msra.mxu0 0.0
  %160 = vmatprep.subr.mxu0 0.0
  %161 = vmatpush1.msra.mxu0 0.0
  %162 = vmatprep.subr.mxu0 0.0
  %163 = vmatpush1.msra.mxu0 0.0
  %164 = vmatprep.subr.mxu0 0.0
  %165 = vmatpush1.msra.mxu0 0.0
  %166 = vmatprep.subr.mxu0 0.0
  %167 = vmatpush1.msra.mxu0 0.0
  %168 = vmatprep.subr.mxu0 0.0
  %169 = vmatpush1.msra.mxu0 0.0
  %170 = vmatprep.mubr.f32.mxu0 0.0
  %171 = vmatmul.mubr.f32.gmra.mrb[0].mxu0 %v47
  %v172 = vpop.f32.mrb[0].mxu0
  %v173 = vadd.f32 %v43, %v172
  %v174 = vpop.f32.mrb[0].mxu0
  %175 = vmatprep.mubr.f32.mxu0 0.0
  %176 = vmatmul.mubr.f32.gmra.mrb[0].mxu0 %v50
  %v177 = vpop.f32.mrb[0].mxu0
  %v178 = vadd.f32 %v43, %v177
  %v179 = vpop.f32.mrb[0].mxu0
  %180 = vmatprep.mubr.f32.mxu0 0.0
  %181 = vmatmul.mubr.f32.gmra.mrb[0].mxu0 %v53
  %v182 = vpop.f32.mrb[0].mxu0
  %v183 = vadd.f32 %v43, %v182
  %v184 = vpop.f32.mrb[0].mxu0
  %185 = vmatprep.mubr.f32.mxu0 0.0
  %186 = vmatmul.mubr.f32.gmra.mrb[0].mxu0 %v56
  %v187 = vpop.f32.mrb[0].mxu0
  %v188 = vadd.f32 %v43, %v187
  %v189 = vpop.f32.mrb[0].mxu0
  %190 = vmatprep.mubr.f32.mxu0 0.0
  %191 = vmatmul.mubr.f32.gmra.mrb[0].mxu0 %v59
  %v192 = vpop.f32.mrb[0].mxu0
  %v193 = vadd.f32 %v43, %v192
  %v194 = vpop.f32.mrb[0].mxu0
  %195 = vmatprep.mubr.f32.mxu0 0.0
  %196 = vmatmul.mubr.f32.gmra.mrb[0].mxu0 %v62
  %v197 = vpop.f32.mrb[0].mxu0
  %v198 = vadd.f32 %v43, %v197
  %v199 = vpop.f32.mrb[0].mxu0
  %200 = vmatprep.mubr.f32.mxu0 0.0
  %201 = vmatmul.mubr.f32.gmra.mrb[0].mxu0 %v65
  %v202 = vpop.f32.mrb[0].mxu0
  %v203 = vadd.f32 %v43, %v202
  %v204 = vpop.f32.mrb[0].mxu0
  %205 = vmatprep.mubr.f32.mxu0 0.0
  %206 = vmatmul.mubr.f32.gmra.mrb[0].mxu0 %v68
  %v207 = vpop.f32.mrb[0].mxu0
  %v208 = vadd.f32 %v43, %v207
  %v209 = vpop.f32.mrb[0].mxu0
  %210 = vmatprep.mubr.f32.mxu0 0.0
  %211 = vmatmul.mubr.f32.gmra.mrb[0].mxu0 %v71
  %v212 = vpop.f32.mrb[0].mxu0
  %v213 = vadd.f32 %v43, %v212
  %v214 = vpop.f32.mrb[0].mxu0
  %215 = vmatprep.mubr.f32.mxu0 0.0
  %216 = vmatmul.mubr.f32.gmra.mrb[0].mxu0 %v74
  %v217 = vpop.f32.mrb[0].mxu0
  %v218 = vadd.f32 %v43, %v217
  %v219 = vpop.f32.mrb[0].mxu0
  %220 = vmatprep.mubr.f32.mxu0 0.0
  %221 = vmatmul.mubr.f32.gmra.mrb[0].mxu0 %v77
  %v222 = vpop.f32.mrb[0].mxu0
  %v223 = vadd.f32 %v43, %v222
  %v224 = vpop.f32.mrb[0].mxu0
  %225 = vmatprep.mubr.f32.mxu0 0.0
  %226 = vmatmul.mubr.f32.gmra.mrb[0].mxu0 %v80
  %v227 = vpop.f32.mrb[0].mxu0
  %v228 = vadd.f32 %v43, %v227
  %v229 = vpop.f32.mrb[0].mxu0
  %230 = vmatprep.mubr.f32.mxu0 0.0
  %231 = vmatmul.mubr.f32.gmra.mrb[0].mxu0 %v83
  %v232 = vpop.f32.mrb[0].mxu0
  %v233 = vadd.f32 %v43, %v232
  %v234 = vpop.f32.mrb[0].mxu0
  %235 = vmatprep.mubr.f32.mxu0 0.0
  %236 = vmatmul.mubr.f32.gmra.mrb[0].mxu0 %v86
  %v237 = vpop.f32.mrb[0].mxu0
  %v238 = vadd.f32 %v43, %v237
  %v239 = vpop.f32.mrb[0].mxu0
  %240 = vmatprep.mubr.f32.mxu0 0.0
  %241 = vmatmul.mubr.f32.gmra.mrb[0].mxu0 %v89
  %v242 = vpop.f32.mrb[0].mxu0
  %v243 = vadd.f32 %v43, %v242
  %v244 = vpop.f32.mrb[0].mxu0
  %245 = vmatprep.mubr.f32.mxu0 0.0
  %246 = vmatmul.mubr.f32.gmra.mrb[0].mxu0 %v92
  %v247 = vpop.f32.mrb[0].mxu0
  %v248 = vadd.f32 %v43, %v247
  %v249 = vpop.f32.mrb[0].mxu0
  %250 = vmatprep.mubr.f32.mxu0 0.0
  %251 = vmatmul.mubr.f32.gmra.mrb[0].mxu0 %v95
  %v252 = vpop.f32.mrb[0].mxu0
  %v253 = vadd.f32 %v43, %v252
  %v254 = vpop.f32.mrb[0].mxu0
  %255 = vmatprep.mubr.f32.mxu0 0.0
  %256 = vmatmul.mubr.f32.gmra.mrb[0].mxu0 %v98
  %v257 = vpop.f32.mrb[0].mxu0
  %v258 = vadd.f32 %v43, %v257
  %v259 = vpop.f32.mrb[0].mxu0
  %260 = vmatprep.mubr.f32.mxu0 0.0
  %261 = vmatmul.mubr.f32.gmra.mrb[0].mxu0 %v101
  %v262 = vpop.f32.mrb[0].mxu0
  %v263 = vadd.f32 %v43, %v262
  %v264 = vpop.f32.mrb[0].mxu0
  %265 = vmatprep.mubr.f32.mxu0 0.0
  %266 = vmatmul.mubr.f32.gmra.mrb[0].mxu0 %v104
  %v267 = vpop.f32.mrb[0].mxu0
  %v268 = vadd.f32 %v43, %v267
  %v269 = vpop.f32.mrb[0].mxu0
  %270 = vdwg.mxu0
  %v271 = vpack.c.bf16 %v178, %v173
  %v272 = vpack.c.bf16 %v188, %v183
  %v273 = vpack.c.bf16 %v198, %v193
  %v274 = vpack.c.bf16 %v208, %v203
  %v275 = vpack.c.bf16 %v218, %v213
  %v276 = vpack.c.bf16 %v228, %v223
  %v277 = vpack.c.bf16 %v238, %v233
  %v278 = vpack.c.bf16 %v248, %v243
  %v279 = vpack.c.bf16 %v258, %v253
  %v280 = vpack.c.bf16 %v268, %v263
  %v291 = vunpack.c.l.b16 %v271
  %v292 = vunpack.c.h.b16 %v271
  %v293 = vunpack.c.l.b16 %v272
  %v294 = vunpack.c.h.b16 %v272
  %v295 = vunpack.c.l.b16 %v273
  %v296 = vunpack.c.h.b16 %v273
  %v297 = vunpack.c.l.b16 %v274
  %v298 = vunpack.c.h.b16 %v274
  %v299 = vunpack.c.l.b16 %v275
  %v300 = vunpack.c.h.b16 %v275
  %v301 = vunpack.c.l.b16 %v276
  %v302 = vunpack.c.h.b16 %v276
  %v303 = vunpack.c.l.b16 %v277
  %v304 = vunpack.c.h.b16 %v277
  %v305 = vunpack.c.l.b16 %v278
  %v306 = vunpack.c.h.b16 %v278
  %v307 = vunpack.c.l.b16 %v279
  %v308 = vunpack.c.h.b16 %v279
  %v309 = vunpack.c.l.b16 %v280
  %v310 = vunpack.c.h.b16 %v280
  %v311 = vpack.c.b16 %v291, %v291
  %v312 = vpack.c.b16 %v292, %v292
  %v313 = vpack.c.b16 %v293, %v293
  %v314 = vpack.c.b16 %v294, %v294
  %v315 = vpack.c.b16 %v295, %v295
  %v316 = vpack.c.b16 %v296, %v296
  %v317 = vpack.c.b16 %v297, %v297
  %v318 = vpack.c.b16 %v298, %v298
  %v319 = vpack.c.b16 %v299, %v299
  %v320 = vpack.c.b16 %v300, %v300
  %v321 = vpack.c.b16 %v301, %v301
  %v322 = vpack.c.b16 %v302, %v302
  %v323 = vpack.c.b16 %v303, %v303
  %v324 = vpack.c.b16 %v304, %v304
  %v325 = vpack.c.b16 %v305, %v305
  %v326 = vpack.c.b16 %v306, %v306
  %v327 = vpack.c.b16 %v307, %v307
  %v328 = vpack.c.b16 %v308, %v308
  %v329 = vpack.c.b16 %v309, %v309
  %v330 = vpack.c.b16 %v310, %v310
  %vm351 = vcmask 257024
  %352 = vst.msk [vmem:[%s3] sm:$0xf] %vm351, %v311
  %353 = vst.msk [vmem:[%s3 + $0x4] sm:$0xf] %vm351, %v312
  %354 = vst.msk [vmem:[%s3 + $0x8] sm:$0xf] %vm351, %v313
  %355 = vst.msk [vmem:[%s3 + $0xc] sm:$0xf] %vm351, %v314
  %356 = vst.msk [vmem:[%s3 + $0x10] sm:$0xf] %vm351, %v315
  %357 = vst.msk [vmem:[%s3 + $0x14] sm:$0xf] %vm351, %v316
  %358 = vst.msk [vmem:[%s3 + $0x18] sm:$0xf] %vm351, %v317
  %359 = vst.msk [vmem:[%s3 + $0x1c] sm:$0xf] %vm351, %v318
  %360 = vst.msk [vmem:[%s3 + $0x20] sm:$0xf] %vm351, %v319
  %361 = vst.msk [vmem:[%s3 + $0x24] sm:$0xf] %vm351, %v320
  %362 = vst.msk [vmem:[%s3 + $0x28] sm:$0xf] %vm351, %v321
  %363 = vst.msk [vmem:[%s3 + $0x2c] sm:$0xf] %vm351, %v322
  %364 = vst.msk [vmem:[%s3 + $0x30] sm:$0xf] %vm351, %v323
  %365 = vst.msk [vmem:[%s3 + $0x34] sm:$0xf] %vm351, %v324
  %366 = vst.msk [vmem:[%s3 + $0x38] sm:$0xf] %vm351, %v325
  %367 = vst.msk [vmem:[%s3 + $0x3c] sm:$0xf] %vm351, %v326
  %368 = vst.msk [vmem:[%s3 + $0x40] sm:$0xf] %vm351, %v327
  %369 = vst.msk [vmem:[%s3 + $0x44] sm:$0xf] %vm351, %v328
  %370 = vst.msk [vmem:[%s3 + $0x48] sm:$0xf] %vm351, %v329
  %371 = vst.msk [vmem:[%s3 + $0x4c] sm:$0xf] %vm351, %v330
  // Predicated region
  $region14: #{tpu_custom_call.1} parent=0 // pred_check
    _
  $region15: #{tpu_custom_call.1} parent=0 // pred_check_branch
    %373 = sbr.rel (0) target = $region17
  $region16: #{tpu_custom_call.1} parent=0 // pred_region
    _
  $region17: #{tpu_custom_call.1} parent=0 // pred_fallthru
    _
  // Predicated region
  $region18: #{tpu_custom_call.1} parent=0 // pred_check
    _
  $region19: #{tpu_custom_call.1} parent=0 // pred_check_branch
    %375 = sbr.rel (0) target = $region21
  $region20: #{tpu_custom_call.1} parent=0 // pred_region
    _
  $region21: #{tpu_custom_call.1} parent=0 // pred_fallthru
    _

</llo_original>
